<compile_context>
chip_gen: v7x
topology: tpu7x:2x2x1
jax: 0.10.0
libtpu: 0.0.40
codegen_flags: <defaults>
</compile_context>

<pallas_src>
import jax
import jax.numpy as jnp
from jax import lax
from jax.experimental import pallas as pl
from jax.experimental.pallas import tpu as pltpu


def _round_up(x, m):
    return ((x + m - 1) // m) * m


def _pad_axis(x, axis, new_size):
    pad = new_size - x.shape[axis]
    if pad == 0:
        return x
    widths = [(0, 0)] * x.ndim
    widths[axis] = (0, pad)
    return jnp.pad(x, widths)


def apply_proto_kernel(x_ref, protos_ref, w1_ref, b1_ref, w2_ref, b2_ref, out_ref):
    """One tile of tokens: prototype attention + 'sum' combine + residual FFN."""
    x = x_ref[...]              # (tn, Dp) native dtype
    protos = protos_ref[...]    # (P,  Dp) native dtype

    # Token-vs-prototype scores; contract on the embedding dim (A @ B^T form)
    # so the prototype bank is never transposed inside the kernel.
    scores = lax.dot_general(
        x, protos,
        dimension_numbers=(((1,), (1,)), ((), ())),
        preferred_element_type=jnp.float32)                       # (tn, P) f32

    # Softmax over the prototype bank (exp on EUP, approx reciprocal on EUP).
    scores = scores - jnp.max(scores, axis=-1, keepdims=True)
    e = jnp.exp(scores)
    p = e * pl.reciprocal(jnp.sum(e, axis=-1, keepdims=True), approx=True)

    proto_mix = jnp.dot(p.astype(protos.dtype), protos,
                        preferred_element_type=jnp.float32)       # (tn, Dp) f32

    # combine='sum'
    combined = x.astype(jnp.float32) + proto_mix                  # (tn, Dp) f32

    # Residual feed-forward: Linear(D,F) -> ReLU -> Linear(F,D).
    h = jnp.dot(combined.astype(w1_ref.dtype), w1_ref[...],
                preferred_element_type=jnp.float32)
    h = jnp.maximum(h + b1_ref[...].astype(jnp.float32), 0.0)
    y = jnp.dot(h.astype(w2_ref.dtype), w2_ref[...],
                preferred_element_type=jnp.float32) + b2_ref[...].astype(jnp.float32)

    out_ref[...] = (combined + y).astype(out_ref.dtype)


def apply_proto_pallas(txt_flat, protos, w1, b1, w2, b2, *, tile_n=512):
    """ApplyProto over N tokens, tiled in large row blocks with lane-dense dims."""
    N, D = txt_flat.shape
    P, _ = protos.shape
    F = w1.shape[1]

    # Lane-dense padding to multiples of 128; zero padding is exact here
    # (padded rows/cols of protos/w1/w2/biases contribute nothing).
    Dp = _round_up(D, 128)
    Fp = _round_up(F, 128)

    # Large token tile for MXU fill / step amortization; shrink for tiny N.
    # Multiple of 16 sublanes (covers f32 and bf16 packing).
    tile_n = min(tile_n, _round_up(N, 16))
    Np = _round_up(N, tile_n)

    x_p = _pad_axis(_pad_axis(txt_flat, 1, Dp), 0, Np)
    protos_p = _pad_axis(protos, 1, Dp)
    w1_p = _pad_axis(_pad_axis(w1, 0, Dp), 1, Fp)
    b1_p = _pad_axis(b1.reshape(1, F), 1, Fp)
    w2_p = _pad_axis(_pad_axis(w2, 0, Fp), 1, Dp)
    b2_p = _pad_axis(b2.reshape(1, D), 1, Dp)

    grid = (Np // tile_n,)

    # VMEM budget: double-buffered token/output tiles + weights (DMA'd once),
    # with 2x headroom; capped to fit v7x's smaller (64 MiB) VMEM.
    x_itemsize = jnp.dtype(txt_flat.dtype).itemsize
    w_itemsize = jnp.dtype(w1.dtype).itemsize
    tile_bytes = tile_n * Dp * x_itemsize
    weight_bytes = (P * Dp + Dp * Fp + Fp + Fp * Dp + Dp) * w_itemsize
    vmem_limit = int(min(64 * 1024 * 1024,
                         max(16 * 1024 * 1024,
                             2 * (4 * tile_bytes + 2 * weight_bytes))))

    out_p = pl.pallas_call(
        apply_proto_kernel,
        out_shape=jax.ShapeDtypeStruct((Np, Dp), txt_flat.dtype),
        grid_spec=pltpu.PrefetchScalarGridSpec(
            num_scalar_prefetch=0,
            grid=grid,
            in_specs=[
                pl.BlockSpec((tile_n, Dp), lambda i: (i, 0)),   # tokens (tiled)
                pl.BlockSpec((P, Dp), lambda i: (0, 0)),        # prototype bank
                pl.BlockSpec((Dp, Fp), lambda i: (0, 0)),       # ffn W1
                pl.BlockSpec((1, Fp), lambda i: (0, 0)),        # ffn b1
                pl.BlockSpec((Fp, Dp), lambda i: (0, 0)),       # ffn W2
                pl.BlockSpec((1, Dp), lambda i: (0, 0)),        # ffn b2
            ],
            out_specs=pl.BlockSpec((tile_n, Dp), lambda i: (i, 0)),
        ),
        compiler_params=pltpu.CompilerParams(
            dimension_semantics=("parallel",),
            vmem_limit_bytes=vmem_limit),
    )(x_p, protos_p, w1_p, b1_p, w2_p, b2_p)

    return out_p[:N, :D]


class TransformFeaturesPallas:
    """JAX/Pallas port of TransformFeatures (forward pass only)."""

    def __init__(self, txt_dim, proto_count, dim_feedforward, key):
        k1, k2, k3, k4, k5 = jax.random.split(key, 5)
        self.protos = jax.random.normal(k1, (proto_count, txt_dim), jnp.float32) * 0.02
        self.w1 = jax.random.normal(k2, (txt_dim, dim_feedforward), jnp.float32) * 0.02
        self.b1 = jax.random.normal(k3, (dim_feedforward,), jnp.float32) * 0.02
        self.w2 = jax.random.normal(k4, (dim_feedforward, txt_dim), jnp.float32) * 0.02
        self.b2 = jax.random.normal(k5, (txt_dim,), jnp.float32) * 0.02

    def __call__(self, img_feat, txt_feat):
        bs, seq_length, em_dim = txt_feat.shape
        txt_flat = txt_feat.reshape(bs * seq_length, em_dim)
        txt_after_proto = apply_proto_pallas(
            txt_flat, self.protos, self.w1, self.b1, self.w2, self.b2)
        txt_after_proto = txt_after_proto.reshape(1, bs, -1)
        return img_feat, txt_after_proto


def _reference_apply_proto(x, protos, w1, b1, w2, b2):
    """Pure-JAX reference of the assumed ApplyProto semantics."""
    scores = x @ protos.T
    p = jax.nn.softmax(scores, axis=-1)
    combined = x + p @ protos
    h = jax.nn.relu(combined @ w1 + b1)
    y = h @ w2 + b2
    return combined + y


if __name__ == "__main__":
    key = jax.random.PRNGKey(0)
    k_img, k_txt, k_params = jax.random.split(key, 3)

    bs, seq, txt_dim = 2, 8, 32
    img_dim = 64
    proto_count = 16
    dim_feedforward = 64

    img_feat = jax.random.normal(k_img, (bs, img_dim), jnp.float32)
    txt_feat = jax.random.normal(k_txt, (bs, seq, txt_dim), jnp.float32)

    model = TransformFeaturesPallas(txt_dim, proto_count, dim_feedforward, k_params)

    img_out, txt_out = model(img_feat, txt_feat)
    jax.block_until_ready((img_out, txt_out))

    assert img_out.shape == (bs, img_dim)
    assert txt_out.shape == (1, bs, seq * txt_dim)

    # Correctness check against a pure-JAX reference (loose tol: approx recip).
    ref = _reference_apply_proto(
        txt_feat.reshape(bs * seq, txt_dim),
        model.protos, model.w1, model.b1, model.w2, model.b2)
    max_err = float(jnp.max(jnp.abs(txt_out.reshape(bs * seq, txt_dim) - ref)))
    assert max_err < 1e-2, f"max abs err {max_err}"

    print("KERNEL_OK")
</pallas_src>

<mosaic_0001>
module attributes {stable_mosaic.version = 11 : i64} {
  func.func @apply_proto_kernel(%arg0: i32, %arg1: memref<16x128xf32, #tpu.memory_space<vmem>>, %arg2: memref<16x128xf32, #tpu.memory_space<vmem>>, %arg3: memref<128x128xf32, #tpu.memory_space<vmem>>, %arg4: memref<1x128xf32, #tpu.memory_space<vmem>>, %arg5: memref<128x128xf32, #tpu.memory_space<vmem>>, %arg6: memref<1x128xf32, #tpu.memory_space<vmem>>, %arg7: memref<16x128xf32, #tpu.memory_space<vmem>>) attributes {dimension_semantics = [#tpu.dimension_semantics<parallel>], iteration_bounds = array<i64: 1>, scalar_prefetch = 0 : i64, scratch_operands = 0 : i64, tpu.core_type = #tpu.core_type<tc>, window_params = [{transform_indices = @transform_0, window_bounds = array<i64: 16, 128>}, {pipeline_mode = #tpu.pipeline_mode<synchronous>, transform_indices = @transform_1, window_bounds = array<i64: 16, 128>}, {pipeline_mode = #tpu.pipeline_mode<synchronous>, transform_indices = @transform_2, window_bounds = array<i64: 128, 128>}, {pipeline_mode = #tpu.pipeline_mode<synchronous>, transform_indices = @transform_3, window_bounds = array<i64: 1, 128>}, {pipeline_mode = #tpu.pipeline_mode<synchronous>, transform_indices = @transform_4, window_bounds = array<i64: 128, 128>}, {pipeline_mode = #tpu.pipeline_mode<synchronous>, transform_indices = @transform_5, window_bounds = array<i64: 1, 128>}, {transform_indices = @transform_6, window_bounds = array<i64: 16, 128>}]} {
    %c0 = arith.constant 0 : index
    %c0_0 = arith.constant 0 : index
    %0 = vector.load %arg1[%c0, %c0_0] : memref<16x128xf32, #tpu.memory_space<vmem>>, vector<16x128xf32>
    %c0_1 = arith.constant 0 : index
    %c0_2 = arith.constant 0 : index
    %1 = vector.load %arg2[%c0_1, %c0_2] : memref<16x128xf32, #tpu.memory_space<vmem>>, vector<16x128xf32>
    %cst = arith.constant dense<0.000000e+00> : vector<16x16xf32>
    %2 = tpu.matmul %0, %1, %cst {dimension_numbers = #tpu.dot_dimension_numbers<[1], [1], [0], [0], [0, 0, 1, 0], [], []>} : vector<16x128xf32>, vector<16x128xf32>, vector<16x16xf32> -> vector<16x16xf32>
    %cst_3 = arith.constant dense<0xFF800000> : vector<16xf32>
    %3 = vector.multi_reduction <maximumf>, %2, %cst_3 [1] : vector<16x16xf32> to vector<16xf32>
    %4 = vector.shape_cast %3 : vector<16xf32> to vector<16x1xf32>
    %5 = vector.broadcast %4 : vector<16x1xf32> to vector<16x16xf32>
    %6 = arith.subf %2, %5 : vector<16x16xf32>
    %7 = math.exp %6 : vector<16x16xf32>
    %cst_4 = arith.constant dense<0.000000e+00> : vector<16xf32>
    %8 = vector.multi_reduction <add>, %7, %cst_4 [1] : vector<16x16xf32> to vector<16xf32>
    %9 = vector.shape_cast %8 : vector<16xf32> to vector<16x1xf32>
    %10 = tpu.reciprocal %9 {approx = true} : vector<16x1xf32> -> vector<16x1xf32>
    %11 = vector.broadcast %10 : vector<16x1xf32> to vector<16x16xf32>
    %12 = arith.mulf %7, %11 : vector<16x16xf32>
    %cst_5 = arith.constant dense<0.000000e+00> : vector<16x128xf32>
    %13 = tpu.matmul %12, %1, %cst_5 {dimension_numbers = #tpu.dot_dimension_numbers<[1], [0], [0], [1], [0, 0, 1, 1], [], []>} : vector<16x16xf32>, vector<16x128xf32>, vector<16x128xf32> -> vector<16x128xf32>
    %14 = arith.addf %0, %13 : vector<16x128xf32>
    %c0_6 = arith.constant 0 : index
    %c0_7 = arith.constant 0 : index
    %15 = vector.load %arg3[%c0_6, %c0_7] : memref<128x128xf32, #tpu.memory_space<vmem>>, vector<128x128xf32>
    %cst_8 = arith.constant dense<0.000000e+00> : vector<16x128xf32>
    %16 = tpu.matmul %14, %15, %cst_8 {dimension_numbers = #tpu.dot_dimension_numbers<[1], [0], [0], [1], [0, 0, 1, 1], [], []>} : vector<16x128xf32>, vector<128x128xf32>, vector<16x128xf32> -> vector<16x128xf32>
    %c0_9 = arith.constant 0 : index
    %c0_10 = arith.constant 0 : index
    %17 = vector.load %arg4[%c0_9, %c0_10] : memref<1x128xf32, #tpu.memory_space<vmem>>, vector<1x128xf32>
    %18 = vector.broadcast %17 : vector<1x128xf32> to vector<16x128xf32>
    %19 = arith.addf %16, %18 : vector<16x128xf32>
    %cst_11 = arith.constant 0.000000e+00 : f32
    %20 = vector.broadcast %cst_11 : f32 to vector<16x128xf32>
    %21 = arith.maximumf %19, %20 : vector<16x128xf32>
    %c0_12 = arith.constant 0 : index
    %c0_13 = arith.constant 0 : index
    %22 = vector.load %arg5[%c0_12, %c0_13] : memref<128x128xf32, #tpu.memory_space<vmem>>, vector<128x128xf32>
    %cst_14 = arith.constant dense<0.000000e+00> : vector<16x128xf32>
    %23 = tpu.matmul %21, %22, %cst_14 {dimension_numbers = #tpu.dot_dimension_numbers<[1], [0], [0], [1], [0, 0, 1, 1], [], []>} : vector<16x128xf32>, vector<128x128xf32>, vector<16x128xf32> -> vector<16x128xf32>
    %c0_15 = arith.constant 0 : index
    %c0_16 = arith.constant 0 : index
    %24 = vector.load %arg6[%c0_15, %c0_16] : memref<1x128xf32, #tpu.memory_space<vmem>>, vector<1x128xf32>
    %25 = vector.broadcast %24 : vector<1x128xf32> to vector<16x128xf32>
    %26 = arith.addf %23, %25 : vector<16x128xf32>
    %27 = arith.addf %14, %26 : vector<16x128xf32>
    %c0_17 = arith.constant 0 : index
    %c0_18 = arith.constant 0 : index
    %28 = vector.load %arg7[%c0_17, %c0_18] : memref<16x128xf32, #tpu.memory_space<vmem>>, vector<16x128xf32>
    tpu.vector_store %arg7[%c0_17, %c0_18], %27 {strides = array<i32>} : memref<16x128xf32, #tpu.memory_space<vmem>>, vector<16x128xf32>,
    return
  }
  func.func @transform_0(%arg0: i32) -> (i32, i32) {
    %c0_i32 = arith.constant 0 : i32
    %c0_i32_0 = arith.constant 0 : i32
    return %arg0, %c0_i32 : i32, i32
  }
  func.func @transform_1(%arg0: i32) -> (i32, i32) {
    %c0_i32 = arith.constant 0 : i32
    %c0_i32_0 = arith.constant 0 : i32
    %c0_i32_1 = arith.constant 0 : i32
    return %c0_i32, %c0_i32_0 : i32, i32
  }
  func.func @transform_2(%arg0: i32) -> (i32, i32) {
    %c0_i32 = arith.constant 0 : i32
    %c0_i32_0 = arith.constant 0 : i32
    %c0_i32_1 = arith.constant 0 : i32
    return %c0_i32, %c0_i32_0 : i32, i32
  }
  func.func @transform_3(%arg0: i32) -> (i32, i32) {
    %c0_i32 = arith.constant 0 : i32
    %c0_i32_0 = arith.constant 0 : i32
    %c0_i32_1 = arith.constant 0 : i32
    return %c0_i32, %c0_i32_0 : i32, i32
  }
  func.func @transform_4(%arg0: i32) -> (i32, i32) {
    %c0_i32 = arith.constant 0 : i32
    %c0_i32_0 = arith.constant 0 : i32
    %c0_i32_1 = arith.constant 0 : i32
    return %c0_i32, %c0_i32_0 : i32, i32
  }
  func.func @transform_5(%arg0: i32) -> (i32, i32) {
    %c0_i32 = arith.constant 0 : i32
    %c0_i32_0 = arith.constant 0 : i32
    %c0_i32_1 = arith.constant 0 : i32
    return %c0_i32, %c0_i32_0 : i32, i32
  }
  func.func @transform_6(%arg0: i32) -> (i32, i32) {
    %c0_i32 = arith.constant 0 : i32
    %c0_i32_0 = arith.constant 0 : i32
    return %arg0, %c0_i32 : i32, i32
  }
}

</mosaic_0001>

<llo_original>
// kernel: tpu_custom_call.1
$region0: #{tpu_custom_call.1}
  #allocation0 [shape = 'u32[]', space=smem, size = 0x4, offset = 0x4, fixed_abs, tag = 'smem constant byte address 0x4 - core index']
  #allocation1 [shape = 'u32[144,128]{1,0:T(1,128)}', space=vmem, size = 0x12000, scoped, tag = 'internal scratch']
  %s0 = inlined_call_operand.hbm [shape: f32[16,128], index: 0, kind: input, shape index: {}]
  %s1 = inlined_call_operand.hbm [shape: f32[16,128], index: 1, kind: input, shape index: {}]
  %s2 = inlined_call_operand.hbm [shape: f32[128,128], index: 2, kind: input, shape index: {}]
  %s3 = inlined_call_operand.vmem [shape: f32[1,128], index: 3, kind: input, shape index: {}]
  %s4 = inlined_call_operand.hbm [shape: f32[128,128], index: 4, kind: input, shape index: {}]
  %s5 = inlined_call_operand.vmem [shape: f32[1,128], index: 5, kind: input, shape index: {}]
  %s6 = inlined_call_operand.hbm [shape: f32[16,128], index: 6, kind: output, shape index: {}]
  %s7 = sld [smem:[#allocation0]]
  $region50: #{tpu_custom_call.1} parent=0
    _
  %s9 = ssub.s32 1, %s7
  %s10 = scalar_select 0, %s9, %s7
  $region1: #{tpu_custom_call.1} parent=0
    #allocation2 [shape = 'u8[8192]{0}', space=vmem, size = 0x2000, scoped, tag = 'input window, operand 0, single buffered']
    #allocation3 [shape = 's32[1]{0}', space=sflag, size = 0x4, scoped, tag = 'scoped memory for tpu_custom_call.1']
    #allocation4 [shape = 's32[1]{0}', space=sflag, size = 0x4, scoped, tag = 'scoped memory for tpu_custom_call.1']
    #allocation5 [shape = 'u8[8192]{0}', space=vmem, size = 0x2000, scoped, tag = 'input window, operand 1, single buffered']
    #allocation6 [shape = 's32[1]{0}', space=sflag, size = 0x4, scoped, tag = 'scoped memory for tpu_custom_call.1']
    #allocation7 [shape = 'u8[65536]{0}', space=vmem, size = 0x10000, scoped, tag = 'input window, operand 2, single buffered']
    #allocation8 [shape = 'u8[65536]{0}', space=vmem, size = 0x10000, scoped, tag = 'input window, operand 4, single buffered']
    #allocation9 [shape = 's32[1]{0}', space=sflag, size = 0x4, scoped, tag = 'scoped memory for tpu_custom_call.1']
    #allocation10 [shape = 'u8[8192]{0}', space=vmem, size = 0x2000, scoped, tag = 'output window, operand 0, single buffered']
    %11 = vsyncpa [#allocation3], 0
    %12 = vsyncpa [#allocation6], 0
    %13 = vsyncpa [#allocation9], 0
    %14 = vsyncpa [#allocation4], 0
    // Predicated region
    $region2: #{tpu_custom_call.1} parent=1 // pred_check
      _
    $region3: #{tpu_custom_call.1} parent=1 // pred_check_branch
      %16 = sbr.rel (0) target = $region5
    $region4: #{tpu_custom_call.1} parent=1 // pred_region
      %s18 = ssub.s32 256, 256
      %19 = vsyncadd [#allocation3], %s18
      %s20 = sshll.u32 [#allocation2], 4
      %s21 = int_to_ptr.vmem [resolvable:$true] %s20
      %26 = dma.hbm_to_vmem [thread:$0]  %s0, 256, %s21, [#allocation3], 128, 128, 8
    $region5: #{tpu_custom_call.1} parent=1 // pred_fallthru
      _
    // Predicated region
    $region6: #{tpu_custom_call.1} parent=1 // pred_check
      _
    $region7: #{tpu_custom_call.1} parent=1 // pred_check_branch
      %28 = sbr.rel (0) target = $region9
    $region8: #{tpu_custom_call.1} parent=1 // pred_region
      %s30 = ssub.s32 256, 256
      %31 = vsyncadd [#allocation6], %s30
      %s32 = sshll.u32 [#allocation5], 4
      %s33 = int_to_ptr.vmem [resolvable:$true] %s32
      %38 = dma.hbm_to_vmem [thread:$0]  %s1, 256, %s33, [#allocation6], 128, 128, 8
    $region9: #{tpu_custom_call.1} parent=1 // pred_fallthru
      _
    // Predicated region
    $region10: #{tpu_custom_call.1} parent=1 // pred_check
      _
    $region11: #{tpu_custom_call.1} parent=1 // pred_check_branch
      %40 = sbr.rel (0) target = $region13
    $region12: #{tpu_custom_call.1} parent=1 // pred_region
      %s42 = ssub.s32 2048, 2048
      %43 = vsyncadd [#allocation6], %s42
      %s44 = sshll.u32 [#allocation7], 4
      %s45 = int_to_ptr.vmem [resolvable:$true] %s44
      %50 = dma.hbm_to_vmem [thread:$0]  %s2, 2048, %s45, [#allocation6], 128, 128, 8
    $region13: #{tpu_custom_call.1} parent=1 // pred_fallthru
      _
    // Predicated region
    $region14: #{tpu_custom_call.1} parent=1 // pred_check
      _
    $region15: #{tpu_custom_call.1} parent=1 // pred_check_branch
      %52 = sbr.rel (0) target = $region17
    $region16: #{tpu_custom_call.1} parent=1 // pred_region
      _
    $region17: #{tpu_custom_call.1} parent=1 // pred_fallthru
      _
    // Predicated region
    $region18: #{tpu_custom_call.1} parent=1 // pred_check
      _
    $region19: #{tpu_custom_call.1} parent=1 // pred_check_branch
      %54 = sbr.rel (0) target = $region21
    $region20: #{tpu_custom_call.1} parent=1 // pred_region
      %s56 = ssub.s32 2048, 2048
      %57 = vsyncadd [#allocation9], %s56
      %s58 = sshll.u32 [#allocation8], 4
      %s59 = int_to_ptr.vmem [resolvable:$true] %s58
      %64 = dma.hbm_to_vmem [thread:$0]  %s4, 2048, %s59, [#allocation9], 128, 128, 8
    $region21: #{tpu_custom_call.1} parent=1 // pred_fallthru
      _
    // Predicated region
    $region22: #{tpu_custom_call.1} parent=1 // pred_check
      _
    $region23: #{tpu_custom_call.1} parent=1 // pred_check_branch
      %66 = sbr.rel (0) target = $region25
    $region24: #{tpu_custom_call.1} parent=1 // pred_region
      _
    $region25: #{tpu_custom_call.1} parent=1 // pred_fallthru
      _
    // Predicated region
    $region26: #{tpu_custom_call.1} parent=1 // pred_check
      _
    $region27: #{tpu_custom_call.1} parent=1 // pred_check_branch
      %68 = sbr.rel (0) target = $region29
    $region28: #{tpu_custom_call.1} parent=1 // pred_region
      %69 = dma.done [#allocation3], 256
    $region29: #{tpu_custom_call.1} parent=1 // pred_fallthru
      _
    // Predicated region
    $region30: #{tpu_custom_call.1} parent=1 // pred_check
      _
    $region31: #{tpu_custom_call.1} parent=1 // pred_check_branch
      %71 = sbr.rel (0) target = $region33
    $region32: #{tpu_custom_call.1} parent=1 // pred_region
      %72 = dma.done [#allocation6], 256
    $region33: #{tpu_custom_call.1} parent=1 // pred_fallthru
      _
    // Predicated region
    $region34: #{tpu_custom_call.1} parent=1 // pred_check
      _
    $region35: #{tpu_custom_call.1} parent=1 // pred_check_branch
      %74 = sbr.rel (0) target = $region37
    $region36: #{tpu_custom_call.1} parent=1 // pred_region
      %75 = dma.done [#allocation6], 2048
    $region37: #{tpu_custom_call.1} parent=1 // pred_fallthru
      _
    // Predicated region
    $region38: #{tpu_custom_call.1} parent=1 // pred_check
      _
    $region39: #{tpu_custom_call.1} parent=1 // pred_check_branch
      %77 = sbr.rel (0) target = $region41
    $region40: #{tpu_custom_call.1} parent=1 // pred_region
      %78 = dma.done [#allocation9], 2048
    $region41: #{tpu_custom_call.1} parent=1 // pred_fallthru
      _
    %v79 = vld [vmem:[#allocation2] sm:$0xff]
    %v80 = vld [vmem:[#allocation2 + $0x8] sm:$0xff]
    %v81 = vld [vmem:[#allocation5] sm:$0xff]
    %v82 = vld [vmem:[#allocation5 + $0x8] sm:$0xff]
    %83 = vmatprep.subr.mxu0 0.0
    %84 = vmatpush1.xpose.msra.mxu0 %v81
    %85 = vmatprep.subr.mxu0 0.0
    %86 = vmatpush1.xpose.msra.mxu0 %v82
    %87 = vmatprep.subr.mxu0 0.0
    %88 = vmatpush1.xpose.msra.mxu0 0.0
    %89 = vmatprep.subr.mxu0 0.0
    %90 = vmatpush1.xpose.msra.mxu0 0.0
    %91 = vmatprep.subr.mxu0 0.0
    %92 = vmatpush1.xpose.msra.mxu0 0.0
    %93 = vmatprep.subr.mxu0 0.0
    %94 = vmatpush1.xpose.msra.mxu0 0.0
    %95 = vmatprep.subr.mxu0 0.0
    %96 = vmatpush1.xpose.msra.mxu0 0.0
    %97 = vmatprep.subr.mxu0 0.0
    %98 = vmatpush1.xpose.msra.mxu0 0.0
    %99 = vmatprep.subr.mxu0 0.0
    %100 = vmatpush1.xpose.msra.mxu0 0.0
    %101 = vmatprep.subr.mxu0 0.0
    %102 = vmatpush1.xpose.msra.mxu0 0.0
    %103 = vmatprep.subr.mxu0 0.0
    %104 = vmatpush1.xpose.msra.mxu0 0.0
    %105 = vmatprep.subr.mxu0 0.0
    %106 = vmatpush1.xpose.msra.mxu0 0.0
    %107 = vmatprep.subr.mxu0 0.0
    %108 = vmatpush1.xpose.msra.mxu0 0.0
    %109 = vmatprep.subr.mxu0 0.0
    %110 = vmatpush1.xpose.msra.mxu0 0.0
    %111 = vmatprep.subr.mxu0 0.0
    %112 = vmatpush1.xpose.msra.mxu0 0.0
    %113 = vmatprep.subr.mxu0 0.0
    %114 = vmatpush1.xpose.msra.mxu0 0.0
    %115 = vmatprep.subr.mxu0 0.0
    %116 = vmatpush1.xpose.msra.mxu0 0.0
    %117 = vmatprep.subr.mxu0 0.0
    %118 = vmatpush1.xpose.msra.mxu0 0.0
    %119 = vmatprep.subr.mxu0 0.0
    %120 = vmatpush1.xpose.msra.mxu0 0.0
    %121 = vmatprep.subr.mxu0 0.0
    %122 = vmatpush1.xpose.msra.mxu0 0.0
    %123 = vmatprep.subr.mxu0 0.0
    %124 = vmatpush1.xpose.msra.mxu0 0.0
    %125 = vmatprep.subr.mxu0 0.0
    %126 = vmatpush1.xpose.msra.mxu0 0.0
    %127 = vmatprep.subr.mxu0 0.0
    %128 = vmatpush1.xpose.msra.mxu0 0.0
    %129 = vmatprep.subr.mxu0 0.0
    %130 = vmatpush1.xpose.msra.mxu0 0.0
    %131 = vmatprep.subr.mxu0 0.0
    %132 = vmatpush1.xpose.msra.mxu0 0.0
    %133 = vmatprep.subr.mxu0 0.0
    %134 = vmatpush1.xpose.msra.mxu0 0.0
    %135 = vmatprep.subr.mxu0 0.0
    %136 = vmatpush1.xpose.msra.mxu0 0.0
    %137 = vmatprep.subr.mxu0 0.0
    %138 = vmatpush1.xpose.msra.mxu0 0.0
    %139 = vmatprep.subr.mxu0 0.0
    %140 = vmatpush1.xpose.msra.mxu0 0.0
    %141 = vmatprep.subr.mxu0 0.0
    %142 = vmatpush1.xpose.msra.mxu0 0.0
    %143 = vmatprep.subr.mxu0 0.0
    %144 = vmatpush1.xpose.msra.mxu0 0.0
    %145 = vmatprep.subr.mxu0 0.0
    %146 = vmatpush1.xpose.msra.mxu0 0.0
    %147 = vmatprep.mubr.f32.mxu0 0.0
    %148 = vmatmul.mubr.f32.gmra.mrb[0].mxu0 %v79
    %v149 = vpop.f32.mrb[0].mxu0
    %v150 = vadd.f32 0.0, %v149
    %v151 = vpop.f32.mrb[0].mxu0
    %152 = vmatprep.mubr.f32.mxu0 0.0
    %153 = vmatmul.mubr.f32.gmra.mrb[0].mxu0 %v80
    %v154 = vpop.f32.mrb[0].mxu0
    %v155 = vadd.f32 0.0, %v154
    %v156 = vpop.f32.mrb[0].mxu0
    %157 = vdwg.mxu0
    %vm158 = vcmask 130048
    %v159 = vsel %vm158, %v150, -inf
    %160 = vmax.xlane.f32.xlu0 %v159
    %v161 = vpop.xlane.xlu0 %160
    %v162 = vsel %vm158, %v155, -inf
    %163 = vmax.xlane.f32.xlu0 %v162
    %v164 = vpop.xlane.xlu0 %163
    %v165 = vsub.f32 %v150, %v161
    %v166 = vsub.f32 %v155, %v164
    %v167 = vmul.f32 %v165, 1.442695
    %v168 = vpow.pop %v167
    %v169 = vmul.f32 %v166, 1.442695
    %v170 = vpow.pop %v169
    %v171 = vsel %vm158, %v168, 0.0
    %172 = vadd.xlane.f32.xlu0 %v171
    %v173 = vpop.xlane.xlu0 %172
    %v174 = vsel %vm158, %v170, 0.0
    %175 = vadd.xlane.f32.xlu0 %v174
    %v176 = vpop.xlane.xlu0 %175
    %v177 = vrcp.pop %v173
    %v178 = vrcp.pop %v176
    %v179 = vmul.f32 %v168, %v177
    %v180 = vmul.f32 %v170, %v178
    %v182 = vsel %vm158, %v179, 0
    %v185 = vsel %vm158, %v180, 0
    %187 = vmatprep.subr.mxu0 0.0
    %188 = vmatpush1.msra.mxu0 %v81
    %189 = vmatprep.subr.mxu0 0.0
    %190 = vmatpush1.msra.mxu0 %v82
    %191 = vmatprep.subr.mxu0 0.0
    %192 = vmatpush1.msra.mxu0 0.0
    %193 = vmatprep.subr.mxu0 0.0
    %194 = vmatpush1.msra.mxu0 0.0
    %195 = vmatprep.subr.mxu0 0.0
    %196 = vmatpush1.msra.mxu0 0.0
    %197 = vmatprep.subr.mxu0 0.0
    %198 = vmatpush1.msra.mxu0 0.0
    %199 = vmatprep.subr.mxu0 0.0
    %200 = vmatpush1.msra.mxu0 0.0
    %201 = vmatprep.subr.mxu0 0.0
    %202 = vmatpush1.msra.mxu0 0.0
    %203 = vmatprep.subr.mxu0 0.0
    %204 = vmatpush1.msra.mxu0 0.0
    %205 = vmatprep.subr.mxu0 0.0
    %206 = vmatpush1.msra.mxu0 0.0
    %207 = vmatprep.subr.mxu0 0.0
    %208 = vmatpush1.msra.mxu0 0.0
    %209 = vmatprep.subr.mxu0 0.0
    %210 = vmatpush1.msra.mxu0 0.0
    %211 = vmatprep.subr.mxu0 0.0
    %212 = vmatpush1.msra.mxu0 0.0
    %213 = vmatprep.subr.mxu0 0.0
    %214 = vmatpush1.msra.mxu0 0.0
    %215 = vmatprep.subr.mxu0 0.0
    %216 = vmatpush1.msra.mxu0 0.0
    %217 = vmatprep.subr.mxu0 0.0
    %218 = vmatpush1.msra.mxu0 0.0
    %219 = vmatprep.subr.mxu0 0.0
    %220 = vmatpush1.msra.mxu0 0.0
    %221 = vmatprep.subr.mxu0 0.0
    %222 = vmatpush1.msra.mxu0 0.0
    %223 = vmatprep.subr.mxu0 0.0
    %224 = vmatpush1.msra.mxu0 0.0
    %225 = vmatprep.subr.mxu0 0.0
    %226 = vmatpush1.msra.mxu0 0.0
    %227 = vmatprep.subr.mxu0 0.0
    %228 = vmatpush1.msra.mxu0 0.0
    %229 = vmatprep.subr.mxu0 0.0
    %230 = vmatpush1.msra.mxu0 0.0
    %231 = vmatprep.subr.mxu0 0.0
    %232 = vmatpush1.msra.mxu0 0.0
    %233 = vmatprep.subr.mxu0 0.0
    %234 = vmatpush1.msra.mxu0 0.0
    %235 = vmatprep.subr.mxu0 0.0
    %236 = vmatpush1.msra.mxu0 0.0
    %237 = vmatprep.subr.mxu0 0.0
    %238 = vmatpush1.msra.mxu0 0.0
    %239 = vmatprep.subr.mxu0 0.0
    %240 = vmatpush1.msra.mxu0 0.0
    %241 = vmatprep.subr.mxu0 0.0
    %242 = vmatpush1.msra.mxu0 0.0
    %243 = vmatprep.subr.mxu0 0.0
    %244 = vmatpush1.msra.mxu0 0.0
    %245 = vmatprep.subr.mxu0 0.0
    %246 = vmatpush1.msra.mxu0 0.0
    %247 = vmatprep.subr.mxu0 0.0
    %248 = vmatpush1.msra.mxu0 0.0
    %249 = vmatprep.subr.mxu0 0.0
    %250 = vmatpush1.msra.mxu0 0.0
    %251 = vmatprep.mubr.f32.mxu0 0.0
    %252 = vmatmul.mubr.f32.gmra.mrb[0].mxu0 %v182
    %v253 = vpop.f32.mrb[0].mxu0
    %v254 = vadd.f32 0.0, %v253
    %v255 = vpop.f32.mrb[0].mxu0
    %256 = vmatprep.mubr.f32.mxu0 0.0
    %257 = vmatmul.mubr.f32.gmra.mrb[0].mxu0 %v185
    %v258 = vpop.f32.mrb[0].mxu0
    %v259 = vadd.f32 0.0, %v258
    %v260 = vpop.f32.mrb[0].mxu0
    %261 = vdwg.mxu0
    %v262 = vadd.f32 %v79, %v254
    %v263 = vadd.f32 %v80, %v259
    %v264 = vld [vmem:[#allocation7] sm:$0xff]
    %v265 = vld [vmem:[#allocation7 + $0x8] sm:$0xff]
    %v266 = vld [vmem:[#allocation7 + $0x10] sm:$0xff]
    %v267 = vld [vmem:[#allocation7 + $0x18] sm:$0xff]
    %v268 = vld [vmem:[#allocation7 + $0x20] sm:$0xff]
    %v269 = vld [vmem:[#allocation7 + $0x28] sm:$0xff]
    %v270 = vld [vmem:[#allocation7 + $0x30] sm:$0xff]
    %v271 = vld [vmem:[#allocation7 + $0x38] sm:$0xff]
    %v272 = vld [vmem:[#allocation7 + $0x40] sm:$0xff]
    %v273 = vld [vmem:[#allocation7 + $0x48] sm:$0xff]
    %v274 = vld [vmem:[#allocation7 + $0x50] sm:$0xff]
    %v275 = vld [vmem:[#allocation7 + $0x58] sm:$0xff]
    %v276 = vld [vmem:[#allocation7 + $0x60] sm:$0xff]
    %v277 = vld [vmem:[#allocation7 + $0x68] sm:$0xff]
    %v278 = vld [vmem:[#allocation7 + $0x70] sm:$0xff]
    %v279 = vld [vmem:[#allocation7 + $0x78] sm:$0xff]
    %v280 = vld [vmem:[%s3] sm:$0x1]
    %v282 = vlaneseq
    %v283 = vshrl.u32 %v282, 7
    %v284 = vsub.s32 0, %v283
    %v285 = vrot.slane %v280, %v284
    %287 = vmatprep.subr.mxu0 0.0
    %288 = vmatpush1.msra.mxu0 %v264
    %289 = vmatprep.subr.mxu0 0.0
    %290 = vmatpush1.msra.mxu0 %v265
    %291 = vmatprep.subr.mxu0 0.0
    %292 = vmatpush1.msra.mxu0 %v266
    %293 = vmatprep.subr.mxu0 0.0
    %294 = vmatpush1.msra.mxu0 %v267
    %295 = vmatprep.subr.mxu0 0.0
    %296 = vmatpush1.msra.mxu0 %v268
    %297 = vmatprep.subr.mxu0 0.0
    %298 = vmatpush1.msra.mxu0 %v269
    %299 = vmatprep.subr.mxu0 0.0
    %300 = vmatpush1.msra.mxu0 %v270
    %301 = vmatprep.subr.mxu0 0.0
    %302 = vmatpush1.msra.mxu0 %v271
    %303 = vmatprep.subr.mxu0 0.0
    %304 = vmatpush1.msra.mxu0 %v272
    %305 = vmatprep.subr.mxu0 0.0
    %306 = vmatpush1.msra.mxu0 %v273
    %307 = vmatprep.subr.mxu0 0.0
    %308 = vmatpush1.msra.mxu0 %v274
    %309 = vmatprep.subr.mxu0 0.0
    %310 = vmatpush1.msra.mxu0 %v275
    %311 = vmatprep.subr.mxu0 0.0
    %312 = vmatpush1.msra.mxu0 %v276
    %313 = vmatprep.subr.mxu0 0.0
    %314 = vmatpush1.msra.mxu0 %v277
    %315 = vmatprep.subr.mxu0 0.0
    %316 = vmatpush1.msra.mxu0 %v278
    %317 = vmatprep.subr.mxu0 0.0
    %318 = vmatpush1.msra.mxu0 %v279
    %319 = vmatprep.subr.mxu0 0.0
    %320 = vmatpush1.msra.mxu0 0.0
    %321 = vmatprep.subr.mxu0 0.0
    %322 = vmatpush1.msra.mxu0 0.0
    %323 = vmatprep.subr.mxu0 0.0
    %324 = vmatpush1.msra.mxu0 0.0
    %325 = vmatprep.subr.mxu0 0.0
    %326 = vmatpush1.msra.mxu0 0.0
    %327 = vmatprep.subr.mxu0 0.0
    %328 = vmatpush1.msra.mxu0 0.0
    %329 = vmatprep.subr.mxu0 0.0
    %330 = vmatpush1.msra.mxu0 0.0
    %331 = vmatprep.subr.mxu0 0.0
    %332 = vmatpush1.msra.mxu0 0.0
    %333 = vmatprep.subr.mxu0 0.0
    %334 = vmatpush1.msra.mxu0 0.0
    %335 = vmatprep.subr.mxu0 0.0
    %336 = vmatpush1.msra.mxu0 0.0
    %337 = vmatprep.subr.mxu0 0.0
    %338 = vmatpush1.msra.mxu0 0.0
    %339 = vmatprep.subr.mxu0 0.0
    %340 = vmatpush1.msra.mxu0 0.0
    %341 = vmatprep.subr.mxu0 0.0
    %342 = vmatpush1.msra.mxu0 0.0
    %343 = vmatprep.subr.mxu0 0.0
    %344 = vmatpush1.msra.mxu0 0.0
    %345 = vmatprep.subr.mxu0 0.0
    %346 = vmatpush1.msra.mxu0 0.0
    %347 = vmatprep.subr.mxu0 0.0
    %348 = vmatpush1.msra.mxu0 0.0
    %349 = vmatprep.subr.mxu0 0.0
    %350 = vmatpush1.msra.mxu0 0.0
    %351 = vmatprep.mubr.f32.mxu0 0.0
    %352 = vmatmul.mubr.f32.gmra.mrb[0].mxu0 %v262
    %v353 = vpop.f32.mrb[0].mxu0
    %v354 = vadd.f32 %v285, %v353
    %v355 = vpop.f32.mrb[0].mxu0
    %356 = vmatprep.mubr.f32.mxu0 0.0
    %357 = vmatmul.mubr.f32.gmra.mrb[0].mxu0 %v263
    %v358 = vpop.f32.mrb[0].mxu0
    %v359 = vadd.f32 %v285, %v358
    %v360 = vpop.f32.mrb[0].mxu0
    %361 = vdwg.mxu0
    %v362 = vmax.f32 %v354, 0.0
    %v363 = vmax.f32 %v359, 0.0
    %v364 = vld [vmem:[#allocation8] sm:$0xff]
    %v365 = vld [vmem:[#allocation8 + $0x8] sm:$0xff]
    %v366 = vld [vmem:[#allocation8 + $0x10] sm:$0xff]
    %v367 = vld [vmem:[#allocation8 + $0x18] sm:$0xff]
    %v368 = vld [vmem:[#allocation8 + $0x20] sm:$0xff]
    %v369 = vld [vmem:[#allocation8 + $0x28] sm:$0xff]
    %v370 = vld [vmem:[#allocation8 + $0x30] sm:$0xff]
    %v371 = vld [vmem:[#allocation8 + $0x38] sm:$0xff]
    %v372 = vld [vmem:[#allocation8 + $0x40] sm:$0xff]
    %v373 = vld [vmem:[#allocation8 + $0x48] sm:$0xff]
    %v374 = vld [vmem:[#allocation8 + $0x50] sm:$0xff]
    %v375 = vld [vmem:[#allocation8 + $0x58] sm:$0xff]
    %v376 = vld [vmem:[#allocation8 + $0x60] sm:$0xff]
    %v377 = vld [vmem:[#allocation8 + $0x68] sm:$0xff]
    %v378 = vld [vmem:[#allocation8 + $0x70] sm:$0xff]
    %v379 = vld [vmem:[#allocation8 + $0x78] sm:$0xff]
    %v380 = vld [vmem:[%s5] sm:$0x1]
    %v382 = vlaneseq
    %v383 = vshrl.u32 %v382, 7
    %v384 = vsub.s32 0, %v383
    %v385 = vrot.slane %v380, %v384
    %387 = vmatprep.subr.mxu0 0.0
    %388 = vmatpush1.msra.mxu0 %v364
    %389 = vmatprep.subr.mxu0 0.0
    %390 = vmatpush1.msra.mxu0 %v365
    %391 = vmatprep.subr.mxu0 0.0
    %392 = vmatpush1.msra.mxu0 %v366
    %393 = vmatprep.subr.mxu0 0.0
    %394 = vmatpush1.msra.mxu0 %v367
    %395 = vmatprep.subr.mxu0 0.0
    %396 = vmatpush1.msra.mxu0 %v368
    %397 = vmatprep.subr.mxu0 0.0
    %398 = vmatpush1.msra.mxu0 %v369
    %399 = vmatprep.subr.mxu0 0.0
    %400 = vmatpush1.msra.mxu0 %v370
    %401 = vmatprep.subr.mxu0 0.0
    %402 = vmatpush1.msra.mxu0 %v371
    %403 = vmatprep.subr.mxu0 0.0
    %404 = vmatpush1.msra.mxu0 %v372
    %405 = vmatprep.subr.mxu0 0.0
    %406 = vmatpush1.msra.mxu0 %v373
    %407 = vmatprep.subr.mxu0 0.0
    %408 = vmatpush1.msra.mxu0 %v374
    %409 = vmatprep.subr.mxu0 0.0
    %410 = vmatpush1.msra.mxu0 %v375
    %411 = vmatprep.subr.mxu0 0.0
    %412 = vmatpush1.msra.mxu0 %v376
    %413 = vmatprep.subr.mxu0 0.0
    %414 = vmatpush1.msra.mxu0 %v377
    %415 = vmatprep.subr.mxu0 0.0
    %416 = vmatpush1.msra.mxu0 %v378
    %417 = vmatprep.subr.mxu0 0.0
    %418 = vmatpush1.msra.mxu0 %v379
    %419 = vmatprep.subr.mxu0 0.0
    %420 = vmatpush1.msra.mxu0 0.0
    %421 = vmatprep.subr.mxu0 0.0
    %422 = vmatpush1.msra.mxu0 0.0
    %423 = vmatprep.subr.mxu0 0.0
    %424 = vmatpush1.msra.mxu0 0.0
    %425 = vmatprep.subr.mxu0 0.0
    %426 = vmatpush1.msra.mxu0 0.0
    %427 = vmatprep.subr.mxu0 0.0
    %428 = vmatpush1.msra.mxu0 0.0
    %429 = vmatprep.subr.mxu0 0.0
    %430 = vmatpush1.msra.mxu0 0.0
    %431 = vmatprep.subr.mxu0 0.0
    %432 = vmatpush1.msra.mxu0 0.0
    %433 = vmatprep.subr.mxu0 0.0
    %434 = vmatpush1.msra.mxu0 0.0
    %435 = vmatprep.subr.mxu0 0.0
    %436 = vmatpush1.msra.mxu0 0.0
    %437 = vmatprep.subr.mxu0 0.0
    %438 = vmatpush1.msra.mxu0 0.0
    %439 = vmatprep.subr.mxu0 0.0
    %440 = vmatpush1.msra.mxu0 0.0
    %441 = vmatprep.subr.mxu0 0.0
    %442 = vmatpush1.msra.mxu0 0.0
    %443 = vmatprep.subr.mxu0 0.0
    %444 = vmatpush1.msra.mxu0 0.0
    %445 = vmatprep.subr.mxu0 0.0
    %446 = vmatpush1.msra.mxu0 0.0
    %447 = vmatprep.subr.mxu0 0.0
    %448 = vmatpush1.msra.mxu0 0.0
    %449 = vmatprep.subr.mxu0 0.0
    %450 = vmatpush1.msra.mxu0 0.0
    %451 = vmatprep.mubr.f32.mxu0 0.0
    %452 = vmatmul.mubr.f32.gmra.mrb[0].mxu0 %v362
    %v453 = vpop.f32.mrb[0].mxu0
    %v454 = vadd.f32 %v385, %v453
    %v455 = vpop.f32.mrb[0].mxu0
    %456 = vmatprep.mubr.f32.mxu0 0.0
    %457 = vmatmul.mubr.f32.gmra.mrb[0].mxu0 %v363
    %v458 = vpop.f32.mrb[0].mxu0
    %v459 = vadd.f32 %v385, %v458
    %v460 = vpop.f32.mrb[0].mxu0
    %461 = vdwg.mxu0
    %v462 = vadd.f32 %v262, %v454
    %v463 = vadd.f32 %v263, %v459
    %464 = vst [vmem:[#allocation10] sm:$0xff] %v462
    %465 = vst [vmem:[#allocation10 + $0x8] sm:$0xff] %v463
    // Predicated region
    $region42: #{tpu_custom_call.1} parent=1 // pred_check
      _
    $region43: #{tpu_custom_call.1} parent=1 // pred_check_branch
      %467 = sbr.rel (0) target = $region45
    $region44: #{tpu_custom_call.1} parent=1 // pred_region
      %s469 = ssub.s32 256, 256
      %470 = vsyncadd [#allocation4], %s469
      %s471 = sshll.u32 [#allocation10], 4
      %s472 = int_to_ptr.vmem [resolvable:$true] %s471
      %477 = dma.vmem_to_hbm [thread:$0]  %s472, 256, %s6, [#allocation4], 128, 128, 8
    $region45: #{tpu_custom_call.1} parent=1 // pred_fallthru
      _
    // Predicated region
    $region46: #{tpu_custom_call.1} parent=1 // pred_check
      _
    $region47: #{tpu_custom_call.1} parent=1 // pred_check_branch
      %479 = sbr.rel (0) target = $region49
    $region48: #{tpu_custom_call.1} parent=1 // pred_region
      %480 = dma.done [#allocation4], 256
    $region49: #{tpu_custom_call.1} parent=1 // pred_fallthru
      _
    %481 = vsyncpa [#allocation3], 1
    %482 = vsyncpa [#allocation6], 1
    %483 = vsyncpa [#allocation9], 1
    %484 = vsyncpa [#allocation4], 1

</llo_original>
